<compile_context>
chip_gen: v7x
topology: tpu7x:2x2x1
jax: 0.10.0
libtpu: 0.0.40
codegen_flags: <defaults>
</compile_context>

<pallas_src>
import functools

import jax
import jax.numpy as jnp
from jax.experimental import pallas as pl
from jax.experimental.pallas import tpu as pltpu


# ----------------------------------------------------------------------------
# Small helpers
# ----------------------------------------------------------------------------
def _round_up(a, m):
    return -(-a // m) * m


def _largest_tile(n, cap):
    """Largest tile t <= cap with t % 8 == 0 and n % t == 0 (n is a multiple
    of 8 whenever n > cap), or n itself when n <= cap (full-dim block)."""
    if n <= cap:
        return n
    best = 8
    for t in range(8, cap + 1, 8):
        if n % t == 0:
            best = t
    return best


# ----------------------------------------------------------------------------
# Kernel
# ----------------------------------------------------------------------------
def _node_features_kernel(ux_ref, vx_ref, gate_ref, o_ref, acc_ref, den_ref,
                          *, aggregation, fold, hidden):
    # ux_ref  : (1, TI, H)        precomputed U(x_i)/2 rows for this output tile
    # vx_ref  : (1, TJG, KH)      precomputed V(x_j)/2, j lane-folded (KH = fold*H)
    # gate_ref: (1, TI, TJG, KH)  edge-gate tile, j lane-folded (bf16 or f32)
    # o_ref   : (1, TI, H)
    # acc_ref : (TI, KH) f32      sum_jg gate * Vx   (per folded lane group)
    # den_ref : (TI, KH) f32      sum_jg gate        (mean denominator)
    j = pl.program_id(2)
    nj = pl.num_programs(2)

    @pl.when(j == 0)
    def _init():
        acc_ref[...] = jnp.zeros_like(acc_ref)
        if aggregation == "mean":
            den_ref[...] = jnp.zeros_like(den_ref)

    # f32 multiply/accumulate (v5e has no bf16 VALU; the cast is hidden under
    # the dominant gate DMA).
    gate = gate_ref[0].astype(jnp.float32)              # (TI, TJG, KH)
    vx = vx_ref[0].astype(jnp.float32)                  # (TJG, KH)
    acc_ref[...] += jnp.sum(gate * vx[None, :, :], axis=1)
    if aggregation == "mean":
        den_ref[...] += jnp.sum(gate, axis=1)

    @pl.when(j == nj - 1)
    def _finalize():
        def _lane_fold(a):                               # (TI, fold*H) -> (TI, H)
            if fold == 1:
                return a
            out = a[:, 0:hidden]
            for c in range(1, fold):
                out = out + a[:, c * hidden:(c + 1) * hidden]
            return out

        agg = _lane_fold(acc_ref[...])
        if aggregation == "mean":
            agg = agg * pl.reciprocal(1e-20 + _lane_fold(den_ref[...]),
                                      approx=False)
        o_ref[0] = (ux_ref[0].astype(jnp.float32) + agg).astype(o_ref.dtype)


# ----------------------------------------------------------------------------
# Wrapper
# ----------------------------------------------------------------------------
def node_features(x, edge_gate, u_weight, u_bias, v_weight, v_bias,
                  aggregation="sum", gate_dtype=jnp.bfloat16,
                  tile_i=None, tile_jg=None):
    """Pallas implementation of NodeFeatures.forward.

    x:         (B, N, H)
    edge_gate: (B, N, N, H)  (cast to `gate_dtype` for HBM traffic; pass
                              gate_dtype=None to keep the input dtype exactly)
    u_weight, v_weight: (H, H) PyTorch Linear weights (out, in)
    u_bias, v_bias:     (H,)
    """
    assert aggregation in ("sum", "mean")
    B, N, H = x.shape
    assert edge_gate.shape == (B, N, N, H)

    # Lane-folding factor: pack `fold` consecutive j rows into the 128-lane axis.
    fold = max(1, 128 // H) if H < 128 else 1
    KH = fold * H
    kh_pad = _round_up(KH, 128)          # what VMEM actually pads the lane dim to

    gate = edge_gate
    if gate_dtype is not None and gate.dtype != jnp.dtype(gate_dtype):
        gate = gate.astype(gate_dtype)
    itemsize = jnp.dtype(gate.dtype).itemsize

    # ---- generation-aware VMEM budgets -------------------------------------
    try:
        vmem_cap = int(pltpu.get_tpu_info().vmem_capacity_bytes)
    except Exception:
        vmem_cap = 64 << 20                               # conservative (v7x)
    vmem_limit = int(min(vmem_cap * 3 // 4, 96 << 20))    # 48 MiB v7x, 96 MiB v5e/v6e
    gate_budget = vmem_limit // 2                          # double-buffered gate tile

    # ---- i (output-row) tiling ----------------------------------------------
    if tile_i is not None:
        TI = tile_i
        Ni_pad = _round_up(N, TI)
        assert TI % 8 == 0 or TI == Ni_pad
    elif N <= 8:
        TI, Ni_pad = N, N
    else:
        Ni_pad = _round_up(N, 8)
        cap_i = 256
        if B == 1 and Ni_pad >= 16:
            cap_i = min(cap_i, Ni_pad // 2)   # megacore: >= 2 parallel i tiles
        TI = _largest_tile(Ni_pad, max(8, cap_i))

    # ---- j (reduction) tiling in lane-folded groups -------------------------
    NJG = _round_up(N, fold) // fold

    def dbuf_bytes(ti, tjg):             # padding-aware double-buffered gate tile
        return 2 * ti * tjg * kh_pad * itemsize

    if tile_jg is not None:
        TJG = tile_jg
        NJG_pad = _round_up(NJG, TJG)
        assert TJG % 8 == 0 or TJG == NJG_pad
    elif dbuf_bytes(TI, NJG) <= gate_budget:
        TJG, NJG_pad = NJG, NJG           # whole reduction in one block (TJ = N)
    else:
        NJG_pad = _round_up(NJG, 8)
        TJG = _largest_tile(NJG_pad, 512)
        while dbuf_bytes(TI, TJG) > gate_budget and TJG > 8:
            TJG = _largest_tile(NJG_pad, TJG - 8)
        while dbuf_bytes(TI, TJG) > gate_budget and TI > 8:
            TI = _largest_tile(Ni_pad, TI - 8)

    Nj_pad = NJG_pad * fold
    pad_i = Ni_pad - N
    pad_j = Nj_pad - N

    # ---- precompute Ux, Vx with plain XLA matmuls (tiny vs the gate stream) --
    f32 = jnp.float32
    xf = x.astype(f32)
    uw_t = jnp.asarray(u_weight).astype(f32).T            # (H, H)
    vw_t = jnp.asarray(v_weight).astype(f32).T            # (H, H)
    ub = jnp.asarray(u_bias).astype(f32).reshape(1, 1, H)
    vb = jnp.asarray(v_bias).astype(f32).reshape(1, 1, H)
    ux = (xf @ uw_t + ub) * 0.5                            # (B, N, H)
    vx = (xf @ vw_t + vb) * 0.5                            # (B, N, H)

    # ---- zero-padding for unaligned N (exact for both sum and mean) ---------
    if pad_i:
        ux = jnp.pad(ux, ((0, 0), (0, pad_i), (0, 0)))
    if pad_j:
        vx = jnp.pad(vx, ((0, 0), (0, pad_j), (0, 0)))
    if pad_i or pad_j:
        gate = jnp.pad(gate, ((0, 0), (0, pad_i), (0, pad_j), (0, 0)))

    # Free, contiguous lane-folding reshapes.
    gate_f = gate.reshape(B, Ni_pad, NJG_pad, KH)
    vx_f = vx.reshape(B, NJG_pad, KH)

    grid = (B, Ni_pad // TI, NJG_pad // TJG)

    kernel = functools.partial(_node_features_kernel,
                               aggregation=aggregation, fold=fold, hidden=H)

    # Advisory cost hint: edge_gate HBM traffic dominates.
    gate_bytes = B * Ni_pad * NJG_pad * KH * itemsize
    vx_bytes = B * (Ni_pad // TI) * NJG_pad * KH * 4
    ux_bytes = B * Ni_pad * H * 4
    out_bytes = B * Ni_pad * H * jnp.dtype(x.dtype).itemsize
    flops = B * Ni_pad * NJG_pad * KH * (3 if aggregation == "mean" else 2)
    cost = pl.CostEstimate(
        flops=int(flops), transcendentals=0,
        bytes_accessed=int(gate_bytes + vx_bytes + ux_bytes + out_bytes))

    out = pl.pallas_call(
        kernel,
        out_shape=jax.ShapeDtypeStruct((B, Ni_pad, H), x.dtype),
        grid_spec=pltpu.PrefetchScalarGridSpec(
            num_scalar_prefetch=0,
            grid=grid,
            in_specs=[
                pl.BlockSpec((1, TI, H), lambda b, i, j: (b, i, 0)),          # Ux
                pl.BlockSpec((1, TJG, KH), lambda b, i, j: (b, j, 0)),        # Vx folded
                pl.BlockSpec((1, TI, TJG, KH), lambda b, i, j: (b, i, j, 0)), # gate folded
            ],
            out_specs=pl.BlockSpec((1, TI, H), lambda b, i, j: (b, i, 0)),
            scratch_shapes=[
                pltpu.VMEM((TI, KH), jnp.float32),   # sum_j gate*Vx (lane-folded)
                pltpu.VMEM((TI, KH), jnp.float32),   # sum_j gate   (mean denominator)
            ],
        ),
        compiler_params=pltpu.CompilerParams(
            dimension_semantics=("parallel", "parallel", "arbitrary"),
            vmem_limit_bytes=vmem_limit,
        ),
        cost_estimate=cost,
    )(ux, vx_f, gate_f)

    if pad_i:
        out = out[:, :N, :]
    return out


# ----------------------------------------------------------------------------
# Pure-JAX reference (intended GCN semantics; equals the PyTorch forward for B==1)
# ----------------------------------------------------------------------------
def node_features_ref(x, edge_gate, u_weight, u_bias, v_weight, v_bias,
                      aggregation="sum"):
    ux = (x @ u_weight.T + u_bias) / 2
    vx = (x @ v_weight.T + v_bias) / 2
    gate_vx = edge_gate * vx[:, None, :, :]
    if aggregation == "mean":
        return ux + jnp.sum(gate_vx, axis=2) / (1e-20 + jnp.sum(edge_gate, axis=2))
    return ux + jnp.sum(gate_vx, axis=2)


if __name__ == "__main__":
    key = jax.random.PRNGKey(0)
    kx, kg, kuw, kub, kvw, kvb = jax.random.split(key, 6)

    H = 32
    bound = 1.0 / (H ** 0.5)
    u_weight = jax.random.uniform(kuw, (H, H), jnp.float32, -bound, bound)
    u_bias = jax.random.uniform(kub, (H,), jnp.float32, -bound, bound)
    v_weight = jax.random.uniform(kvw, (H, H), jnp.float32, -bound, bound)
    v_bias = jax.random.uniform(kvb, (H,), jnp.float32, -bound, bound)

    def make_inputs(seed, B, N):
        k1, k2 = jax.random.split(jax.random.PRNGKey(seed), 2)
        x = jax.random.normal(k1, (B, N, H), jnp.float32)
        gate = jax.nn.sigmoid(jax.random.normal(k2, (B, N, N, H), jnp.float32))
        return x, gate

    # --- Case 1: B=1, N=16, f32 gate, megacore-split i tiles, single j tile --
    x1, g1 = make_inputs(0, 1, 16)
    for agg in ("sum", "mean"):
        out = jax.block_until_ready(
            node_features(x1, g1, u_weight, u_bias, v_weight, v_bias,
                          aggregation=agg, gate_dtype=None))
        ref = node_features_ref(x1, g1, u_weight, u_bias, v_weight, v_bias,
                                aggregation=agg)
        assert out.shape == (1, 16, H)
        assert jnp.allclose(out, ref, atol=1e-4, rtol=1e-4), f"case1 ({agg})"

    # --- Case 2: B=1, N=64, forced small tiles (multi-step j accumulation) ---
    x2, g2 = make_inputs(1, 1, 64)
    for agg in ("sum", "mean"):
        out = jax.block_until_ready(
            node_features(x2, g2, u_weight, u_bias, v_weight, v_bias,
                          aggregation=agg, gate_dtype=None,
                          tile_i=16, tile_jg=8))
        ref = node_features_ref(x2, g2, u_weight, u_bias, v_weight, v_bias,
                                aggregation=agg)
        assert jnp.allclose(out, ref, atol=1e-4, rtol=1e-4), f"case2 ({agg})"

    # --- Case 3: B=1, N=18 (unaligned -> zero-padded i and j), mean ----------
    x3, g3 = make_inputs(2, 1, 18)
    out = jax.block_until_ready(
        node_features(x3, g3, u_weight, u_bias, v_weight, v_bias,
                      aggregation="mean", gate_dtype=None))
    ref = node_features_ref(x3, g3, u_weight, u_bias, v_weight, v_bias,
                            aggregation="mean")
    assert out.shape == (1, 18, H)
    assert jnp.allclose(out, ref, atol=1e-4, rtol=1e-4), "case3 (mean, padded)"

    # --- Case 4: B=2, bf16 gate (default perf path) --------------------------
    x4, g4 = make_inputs(3, 2, 16)
    out = jax.block_until_ready(
        node_features(x4, g4, u_weight, u_bias, v_weight, v_bias,
                      aggregation="sum"))                    # bf16 gate default
    g4_rounded = g4.astype(jnp.bfloat16).astype(jnp.float32)
    ref = node_features_ref(x4, g4_rounded, u_weight, u_bias, v_weight, v_bias,
                            aggregation="sum")
    assert jnp.allclose(out, ref, atol=1e-3, rtol=1e-3), "case4 (bf16 gate)"

    print("KERNEL_OK")
</pallas_src>

<mosaic_0001>
module attributes {stable_mosaic.version = 11 : i64} {
  func.func @_node_features_kernel(%arg0: i32, %arg1: i32, %arg2: i32, %arg3: memref<1x8x32xf32, #tpu.memory_space<vmem>>, %arg4: memref<1x4x128xf32, #tpu.memory_space<vmem>>, %arg5: memref<1x8x4x128xf32, #tpu.memory_space<vmem>>, %arg6: memref<1x8x32xf32, #tpu.memory_space<vmem>>, %arg7: memref<8x128xf32, #tpu.memory_space<vmem>>, %arg8: memref<8x128xf32, #tpu.memory_space<vmem>>) attributes {dimension_semantics = [#tpu.dimension_semantics<parallel>, #tpu.dimension_semantics<parallel>, #tpu.dimension_semantics<arbitrary>], iteration_bounds = array<i64: 1, 2, 1>, scalar_prefetch = 0 : i64, scratch_operands = 2 : i64, tpu.core_type = #tpu.core_type<tc>, window_params = [{transform_indices = @transform_0, window_bounds = array<i64: 1, 8, 32>}, {transform_indices = @transform_1, window_bounds = array<i64: 1, 4, 128>}, {transform_indices = @transform_2, window_bounds = array<i64: 1, 8, 4, 128>}, {transform_indices = @transform_3, window_bounds = array<i64: 1, 8, 32>}]} {
    %c0_i32 = arith.constant 0 : i32
    %0 = arith.cmpi eq, %arg2, %c0_i32 : i32
    %1 = arith.extui %0 : i1 to i32
    %c0_i32_0 = arith.constant 0 : i32
    %2 = arith.cmpi ne, %1, %c0_i32_0 : i32
    scf.if %2 {
      %cst_13 = arith.constant 0.000000e+00 : f32
      %17 = vector.broadcast %cst_13 : f32 to vector<8x128xf32>
      %c0_14 = arith.constant 0 : index
      %c0_15 = arith.constant 0 : index
      %18 = vector.load %arg7[%c0_14, %c0_15] : memref<8x128xf32, #tpu.memory_space<vmem>>, vector<8x128xf32>
      tpu.vector_store %arg7[%c0_14, %c0_15], %17 {strides = array<i32>} : memref<8x128xf32, #tpu.memory_space<vmem>>, vector<8x128xf32>,
    } else {
    }
    %c0 = arith.constant 0 : index
    %c0_1 = arith.constant 0 : index
    %c0_2 = arith.constant 0 : index
    %c0_3 = arith.constant 0 : index
    %3 = vector.load %arg5[%c0, %c0_1, %c0_2, %c0_3] : memref<1x8x4x128xf32, #tpu.memory_space<vmem>>, vector<1x8x4x128xf32>
    %4 = vector.shape_cast %3 : vector<1x8x4x128xf32> to vector<8x4x128xf32>
    %c0_4 = arith.constant 0 : index
    %c0_5 = arith.constant 0 : index
    %c0_6 = arith.constant 0 : index
    %5 = vector.load %arg4[%c0_4, %c0_5, %c0_6] : memref<1x4x128xf32, #tpu.memory_space<vmem>>, vector<1x4x128xf32>
    %6 = vector.shape_cast %5 : vector<1x4x128xf32> to vector<4x128xf32>
    %c0_7 = arith.constant 0 : index
    %c0_8 = arith.constant 0 : index
    %7 = vector.load %arg7[%c0_7, %c0_8] : memref<8x128xf32, #tpu.memory_space<vmem>>, vector<8x128xf32>
    %8 = vector.shape_cast %6 : vector<4x128xf32> to vector<1x4x128xf32>
    %9 = vector.broadcast %8 : vector<1x4x128xf32> to vector<8x4x128xf32>
    %10 = arith.mulf %4, %9 : vector<8x4x128xf32>
    %cst = arith.constant dense<0.000000e+00> : vector<8x128xf32>
    %11 = vector.multi_reduction <add>, %10, %cst [1] : vector<8x4x128xf32> to vector<8x128xf32>
    %12 = arith.addf %7, %11 : vector<8x128xf32>
    %c0_9 = arith.constant 0 : index
    %c0_10 = arith.constant 0 : index
    %13 = vector.load %arg7[%c0_9, %c0_10] : memref<8x128xf32, #tpu.memory_space<vmem>>, vector<8x128xf32>
    tpu.vector_store %arg7[%c0_9, %c0_10], %12 {strides = array<i32>} : memref<8x128xf32, #tpu.memory_space<vmem>>, vector<8x128xf32>,
    %c0_i32_11 = arith.constant 0 : i32
    %14 = arith.cmpi eq, %arg2, %c0_i32_11 : i32
    %15 = arith.extui %14 : i1 to i32
    %c0_i32_12 = arith.constant 0 : i32
    %16 = arith.cmpi ne, %15, %c0_i32_12 : i32
    scf.if %16 {
      %c0_13 = arith.constant 0 : index
      %c0_14 = arith.constant 0 : index
      %17 = vector.load %arg7[%c0_13, %c0_14] : memref<8x128xf32, #tpu.memory_space<vmem>>, vector<8x128xf32>
      %18 = vector.extract_strided_slice %17 {offsets = [0, 0], sizes = [8, 32], strides = [1, 1]} : vector<8x128xf32> to vector<8x32xf32>
      %19 = vector.extract_strided_slice %17 {offsets = [0, 32], sizes = [8, 32], strides = [1, 1]} : vector<8x128xf32> to vector<8x32xf32>
      %20 = arith.addf %18, %19 : vector<8x32xf32>
      %21 = vector.extract_strided_slice %17 {offsets = [0, 64], sizes = [8, 32], strides = [1, 1]} : vector<8x128xf32> to vector<8x32xf32>
      %22 = arith.addf %20, %21 : vector<8x32xf32>
      %23 = vector.extract_strided_slice %17 {offsets = [0, 96], sizes = [8, 32], strides = [1, 1]} : vector<8x128xf32> to vector<8x32xf32>
      %24 = arith.addf %22, %23 : vector<8x32xf32>
      %c0_15 = arith.constant 0 : index
      %c0_16 = arith.constant 0 : index
      %c0_17 = arith.constant 0 : index
      %25 = vector.load %arg3[%c0_15, %c0_16, %c0_17] : memref<1x8x32xf32, #tpu.memory_space<vmem>>, vector<1x8x32xf32>
      %26 = vector.shape_cast %25 : vector<1x8x32xf32> to vector<8x32xf32>
      %27 = arith.addf %26, %24 : vector<8x32xf32>
      %c0_18 = arith.constant 0 : index
      %c0_19 = arith.constant 0 : index
      %c0_20 = arith.constant 0 : index
      %28 = vector.load %arg6[%c0_18, %c0_19, %c0_20] : memref<1x8x32xf32, #tpu.memory_space<vmem>>, vector<1x8x32xf32>
      %29 = vector.shape_cast %28 : vector<1x8x32xf32> to vector<8x32xf32>
      %30 = vector.shape_cast %27 : vector<8x32xf32> to vector<1x8x32xf32>
      tpu.vector_store %arg6[%c0_18, %c0_19, %c0_20], %30 {strides = array<i32>} : memref<1x8x32xf32, #tpu.memory_space<vmem>>, vector<1x8x32xf32>,
    } else {
    }
    return
  }
  func.func @transform_0(%arg0: i32, %arg1: i32, %arg2: i32) -> (i32, i32, i32) {
    %c0_i32 = arith.constant 0 : i32
    %c0_i32_0 = arith.constant 0 : i32
    return %arg0, %arg1, %c0_i32 : i32, i32, i32
  }
  func.func @transform_1(%arg0: i32, %arg1: i32, %arg2: i32) -> (i32, i32, i32) {
    %c0_i32 = arith.constant 0 : i32
    %c0_i32_0 = arith.constant 0 : i32
    return %arg0, %arg2, %c0_i32 : i32, i32, i32
  }
  func.func @transform_2(%arg0: i32, %arg1: i32, %arg2: i32) -> (i32, i32, i32, i32) {
    %c0_i32 = arith.constant 0 : i32
    %c0_i32_0 = arith.constant 0 : i32
    return %arg0, %arg1, %arg2, %c0_i32 : i32, i32, i32, i32
  }
  func.func @transform_3(%arg0: i32, %arg1: i32, %arg2: i32) -> (i32, i32, i32) {
    %c0_i32 = arith.constant 0 : i32
    %c0_i32_0 = arith.constant 0 : i32
    return %arg0, %arg1, %c0_i32 : i32, i32, i32
  }
}

</mosaic_0001>

<llo_original>
// kernel: tpu_custom_call.1
$region0: #{tpu_custom_call.1}
  #allocation0 [shape = 'u32[]', space=smem, size = 0x4, offset = 0x4, fixed_abs, tag = 'smem constant byte address 0x4 - core index']
  #allocation1 [shape = 'u32[144,128]{1,0:T(1,128)}', space=vmem, size = 0x12000, scoped, tag = 'internal scratch']
  #allocation2 [shape = 'f32[8,128]{1,0:T(8,128)}', space=vmem, size = 0x1000, scoped, tag = 'scratch operand']
  #allocation3 [shape = 'f32[8,128]{1,0:T(8,128)}', space=vmem, size = 0x1000, scoped, tag = 'scratch operand']
  %s0 = inlined_call_operand.hbm [shape: f32[1,16,32], index: 0, kind: input, shape index: {}]
  %s1 = inlined_call_operand.hbm [shape: f32[1,4,128], index: 1, kind: input, shape index: {}]
  %s2 = inlined_call_operand.hbm [shape: f32[1,16,4,128], index: 2, kind: input, shape index: {}]
  %s3 = inlined_call_operand.hbm [shape: f32[1,16,32], index: 3, kind: output, shape index: {}]
  %s4 = sld [smem:[#allocation0]]
  $region65: #{tpu_custom_call.1} parent=0
    _
  %s6 = ssub.s32 1, %s4
  %s7 = scalar_select 0, %s6, %s4
  $region1: #{tpu_custom_call.1} parent=0
    #allocation4 [shape = 'u8[8192]{0}', space=vmem, size = 0x2000, scoped, tag = 'input window, operand 0']
    #allocation5 [shape = 's32[2]{0}', space=sflag, size = 0x8, scoped, tag = 'scoped memory for tpu_custom_call.1']
    #allocation6 [shape = 's32[2]{0}', space=sflag, size = 0x8, scoped, tag = 'scoped memory for tpu_custom_call.1']
    #allocation7 [shape = 'u8[2048]{0}', space=vmem, size = 0x800, scoped, tag = 'input window, operand 1, single buffered']
    #allocation8 [shape = 's32[1]{0}', space=sflag, size = 0x4, scoped, tag = 'scoped memory for tpu_custom_call.1']
    #allocation9 [shape = 'u8[32768]{0}', space=vmem, size = 0x8000, scoped, tag = 'input window, operand 2']
    #allocation10 [shape = 'u8[8192]{0}', space=vmem, size = 0x2000, scoped, tag = 'output window, operand 0']
    %8 = vsyncpa [#allocation5], 0
    %s9 = scalar_lea.sflag [#allocation5], 1
    %10 = vsyncpa %s9, 0
    %11 = vsyncpa [#allocation8], 0
    %12 = vsyncpa [#allocation6], 0
    %s13 = scalar_lea.sflag [#allocation6], 1
    %14 = vsyncpa %s13, 0
    loop: start=0, step=1, limit=4
    $region2: #{tpu_custom_call.1} parent=1 // loop_pre_header
      _
    $region3: #{tpu_custom_call.1} parent=1 // loop_header
      %s16 = sphi 0, %s20
      %p17 = scmp.ge.s32.totalorder %s16, 4
      %s23 = sphi 0, %s42
      %s24 = sphi 0, %s38
      %s25 = sphi 0, %s34
      %s26 = sphi 0, %s23
      %s27 = sphi 0, %s24
      %s28 = sphi 0, %s25
      %s29 = sphi 0, %s26
      %s30 = sphi 0, %s27
      %s31 = sphi 0, %s28
      %s47 = sphi 0, %s49
      %s50 = sphi 0, %s47
      %s51 = sphi 0, %s50
      %s67 = sphi 0, %s51
      %s75 = sphi 0, %s77
      %s78 = sphi 0, %s75
      %s79 = sphi 0, %s78
      %s95 = sphi 0, %s79
      %s105 = sphi 0, %s107
      %s108 = sphi 0, %s105
      %s109 = sphi 0, %s108
      %s125 = sphi 0, %s109
      %s133 = sphi 0, %s135
      %s136 = sphi 0, %s133
      %s137 = sphi 0, %s136
      %s153 = sphi 0, %s137
    $region4: #{tpu_custom_call.1} parent=1 // loop_header_branch
      %19 = sbr.rel (%p17) target = $region8
    $region5: #{tpu_custom_call.1} parent=1 // loop_body
      %s21 = ssub.s32 %s16, 1
      %s22 = ssub.s32 %s16, 2
      %s32 = sadd.s32 1, %s25
      %p33 = scmp.ge.s32.totalorder %s32, 1
      %s34 = scalar_select %p33, 0, %s32
      %s35 = sadd.s32 1, %s24
      %s36 = scalar_select %p33, %s35, %s24
      %p37 = scmp.ge.s32.totalorder %s36, 2
      %s38 = scalar_select %p37, 0, %s36
      %s39 = sadd.s32 1, %s23
      %s40 = scalar_select %p37, %s39, %s23
      %p41 = scmp.ge.s32.totalorder %s40, 1
      %s42 = scalar_select %p41, 0, %s40
      %s43 = ssub.s32 %s23, %s42
      %s44 = ssub.s32 %s24, %s38
      %s45 = sor.u32 %s43, %s44
      %p46 = scmp.eq.s32.totalorder %s45, 0
      %s48 = sadd.s32 %s47, 1
      %s49 = scalar_select %p46, %s47, %s48
      %p52 = pneg %p46
      %p53 = scmp.eq.s32.totalorder %s16, 1
      %p54 = por %p52, %p53
      %p55 = scmp.ne.s32.totalorder %s47, %s50
      %p56 = scmp.eq.s32.totalorder %s16, 0
      %p57 = por %p55, %p56
      %p58 = scmp.ne.s32.totalorder %s47, %s50
      %p59 = scmp.eq.s32.totalorder %s21, 1
      %p60 = por %p58, %p59
      %p61 = scmp.ne.s32.totalorder %s50, %s51
      %p62 = scmp.eq.s32.totalorder %s21, 0
      %p63 = por %p61, %p62
      %p64 = scmp.ne.s32.totalorder %s50, %s51
      %p65 = scmp.eq.s32.totalorder %s22, 1
      %p66 = por %p64, %p65
      %p68 = scmp.ne.s32.totalorder %s51, %s67
      %p69 = scmp.eq.s32.totalorder %s22, 0
      %p70 = por %p68, %p69
      %s71 = ssub.s32 %s23, %s42
      %s72 = ssub.s32 %s25, %s34
      %s73 = sor.u32 %s71, %s72
      %p74 = scmp.eq.s32.totalorder %s73, 0
      %s76 = sadd.s32 %s75, 1
      %s77 = scalar_select %p74, %s75, %s76
      %p80 = pneg %p74
      %p81 = scmp.eq.s32.totalorder %s16, 1
      %p82 = por %p80, %p81
      %p83 = scmp.ne.s32.totalorder %s75, %s78
      %p84 = scmp.eq.s32.totalorder %s16, 0
      %p85 = por %p83, %p84
      %p86 = scmp.ne.s32.totalorder %s75, %s78
      %p87 = scmp.eq.s32.totalorder %s21, 1
      %p88 = por %p86, %p87
      %p89 = scmp.ne.s32.totalorder %s78, %s79
      %p90 = scmp.eq.s32.totalorder %s21, 0
      %p91 = por %p89, %p90
      %p92 = scmp.ne.s32.totalorder %s78, %s79
      %p93 = scmp.eq.s32.totalorder %s22, 1
      %p94 = por %p92, %p93
      %p96 = scmp.ne.s32.totalorder %s79, %s95
      %p97 = scmp.eq.s32.totalorder %s22, 0
      %p98 = por %p96, %p97
      %s99 = ssub.s32 %s23, %s42
      %s100 = ssub.s32 %s24, %s38
      %s101 = sor.u32 %s99, %s100
      %s102 = ssub.s32 %s25, %s34
      %s103 = sor.u32 %s101, %s102
      %p104 = scmp.eq.s32.totalorder %s103, 0
      %s106 = sadd.s32 %s105, 1
      %s107 = scalar_select %p104, %s105, %s106
      %p110 = pneg %p104
      %p111 = scmp.eq.s32.totalorder %s16, 1
      %p112 = por %p110, %p111
      %p113 = scmp.ne.s32.totalorder %s105, %s108
      %p114 = scmp.eq.s32.totalorder %s16, 0
      %p115 = por %p113, %p114
      %p116 = scmp.ne.s32.totalorder %s105, %s108
      %p117 = scmp.eq.s32.totalorder %s21, 1
      %p118 = por %p116, %p117
      %p119 = scmp.ne.s32.totalorder %s108, %s109
      %p120 = scmp.eq.s32.totalorder %s21, 0
      %p121 = por %p119, %p120
      %p122 = scmp.ne.s32.totalorder %s108, %s109
      %p123 = scmp.eq.s32.totalorder %s22, 1
      %p124 = por %p122, %p123
      %p126 = scmp.ne.s32.totalorder %s109, %s125
      %p127 = scmp.eq.s32.totalorder %s22, 0
      %p128 = por %p126, %p127
      %s129 = ssub.s32 %s23, %s42
      %s130 = ssub.s32 %s24, %s38
      %s131 = sor.u32 %s129, %s130
      %p132 = scmp.eq.s32.totalorder %s131, 0
      %s134 = sadd.s32 %s133, 1
      %s135 = scalar_select %p132, %s133, %s134
      %p138 = pneg %p132
      %p139 = scmp.eq.s32.totalorder %s16, 1
      %p140 = por %p138, %p139
      %p141 = scmp.ne.s32.totalorder %s133, %s136
      %p142 = scmp.eq.s32.totalorder %s16, 0
      %p143 = por %p141, %p142
      %p144 = scmp.ne.s32.totalorder %s133, %s136
      %p145 = scmp.eq.s32.totalorder %s21, 1
      %p146 = por %p144, %p145
      %p147 = scmp.ne.s32.totalorder %s136, %s137
      %p148 = scmp.eq.s32.totalorder %s21, 0
      %p149 = por %p147, %p148
      %p150 = scmp.ne.s32.totalorder %s136, %s137
      %p151 = scmp.eq.s32.totalorder %s22, 1
      %p152 = por %p150, %p151
      %p154 = scmp.ne.s32.totalorder %s137, %s153
      %p155 = scmp.eq.s32.totalorder %s22, 0
      %p156 = por %p154, %p155
      %p157 = scmp.le.s32.totalorder 1, %s16
      %p158 = scmp.lt.s32.totalorder %s16, 3
      %p159 = pnand %p157, %p158
      %p160 = pneg %p159
      // Predicated region
      $region9: #{tpu_custom_call.1} parent=5 // pred_check
        _
      $region10: #{tpu_custom_call.1} parent=5 // pred_check_branch
        %162 = sbr.rel (%p159) target = $region12
      $region11: #{tpu_custom_call.1} parent=5 // pred_region
        %s163 = ssub.s32 %s16, 1
        // Predicated region
        $region13: #{tpu_custom_call.1} parent=11 // pred_check
          %p164 = pneg %p91
        $region14: #{tpu_custom_call.1} parent=11 // pred_check_branch
          %166 = sbr.rel (%p164) target = $region16
        $region15: #{tpu_custom_call.1} parent=11 // pred_region
          %s168 = ssub.s32 64, 64
          %169 = vsyncadd [#allocation8], %s168
          %s170 = sadd.s32 %s28, %s26
          %s171 = smul.addr %s170, 64
          %s172 = scalar_lea.hbm %s1, %s171
          %s174 = sshll.u32 [#allocation7], 4
          %s175 = int_to_ptr.vmem [resolvable:$true] %s174
          %177 = dma.hbm_to_vmem [thread:$0]  %s172, 64, %s175, [#allocation8]
        $region16: #{tpu_custom_call.1} parent=11 // pred_fallthru
          _
      $region12: #{tpu_custom_call.1} parent=5 // pred_fallthru
        _
      %p178 = scmp.lt.s32.totalorder %s16, 2
      // Predicated region
      $region17: #{tpu_custom_call.1} parent=5 // pred_check
        %p179 = pneg %p178
      $region18: #{tpu_custom_call.1} parent=5 // pred_check_branch
        %181 = sbr.rel (%p179) target = $region20
      $region19: #{tpu_custom_call.1} parent=5 // pred_region
        // Predicated region
        $region21: #{tpu_custom_call.1} parent=19 // pred_check
          %p182 = pneg %p57
        $region22: #{tpu_custom_call.1} parent=19 // pred_check_branch
          %184 = sbr.rel (%p182) target = $region24
        $region23: #{tpu_custom_call.1} parent=19 // pred_region
          %s185 = sand.u32 %s16, 1
          %s186 = scalar_lea.sflag [#allocation5], %s185
          %s187 = sand.u32 %s47, 1
          %s188 = smul.addr %s187, 8
          %s189 = scalar_lea.vmem [#allocation4], %s188
          %s191 = ssub.s32 128, 128
          %192 = vsyncadd %s186, %s191
          %s193 = smul.addr %s23, 2
          %s194 = sadd.s32 %s24, %s193
          %s195 = smul.addr %s194, 128
          %s196 = scalar_lea.hbm %s0, %s195
          %s198 = sshll.u32 %s189, 4
          %s199 = int_to_ptr.vmem [resolvable:$true] %s198
          %201 = dma.hbm_to_vmem [thread:$0]  %s196, 128, %s199, %s186
        $region24: #{tpu_custom_call.1} parent=19 // pred_fallthru
          _
        // Predicated region
        $region25: #{tpu_custom_call.1} parent=19 // pred_check
          %p202 = pneg %p115
        $region26: #{tpu_custom_call.1} parent=19 // pred_check_branch
          %204 = sbr.rel (%p202) target = $region28
        $region27: #{tpu_custom_call.1} parent=19 // pred_region
          %s205 = sand.u32 %s16, 1
          %s206 = scalar_lea.sflag [#allocation5], %s205
          %s207 = sand.u32 %s105, 1
          %s208 = smul.addr %s207, 32
          %s209 = scalar_lea.vmem [#allocation9], %s208
          %s210 = smul.u32 8, %s24
          %s212 = ssub.s32 512, 512
          %213 = vsyncadd %s206, %s212
          %s214 = sadd.s32 %s25, %s210
          %s215 = smul.addr %s23, 16
          %s216 = sadd.s32 %s214, %s215
          %s217 = smul.addr %s216, 64
          %s218 = scalar_lea.hbm %s2, %s217
          %s219 = sshll.u32 %s209, 4
          %s220 = int_to_ptr.vmem [resolvable:$true] %s219
          %225 = dma.hbm_to_vmem [thread:$0]  %s218, 512, %s220, %s206, 64, 64, 4
        $region28: #{tpu_custom_call.1} parent=19 // pred_fallthru
          _
      $region20: #{tpu_custom_call.1} parent=5 // pred_fallthru
        _
      %p226 = scmp.le.s32.totalorder 1, %s16
      %p227 = scmp.lt.s32.totalorder %s16, 3
      %p228 = pnand %p226, %p227
      %p229 = pneg %p228
      // Predicated region
      $region29: #{tpu_custom_call.1} parent=5 // pred_check
        _
      $region30: #{tpu_custom_call.1} parent=5 // pred_check_branch
        %231 = sbr.rel (%p228) target = $region32
      $region31: #{tpu_custom_call.1} parent=5 // pred_region
        %s232 = ssub.s32 %s16, 1
        %s233 = sand.u32 %s21, 1
        %s234 = scalar_lea.sflag [#allocation5], %s233
        %s235 = sand.u32 %s50, 1
        %s236 = smul.addr %s235, 8
        %s237 = scalar_lea.vmem [#allocation4], %s236
        // Predicated region
        $region33: #{tpu_custom_call.1} parent=31 // pred_check
          %p238 = pneg %p63
        $region34: #{tpu_custom_call.1} parent=31 // pred_check_branch
          %240 = sbr.rel (%p238) target = $region36
        $region35: #{tpu_custom_call.1} parent=31 // pred_region
          %241 = dma.done %s234, 128
        $region36: #{tpu_custom_call.1} parent=31 // pred_fallthru
          _
        // Predicated region
        $region37: #{tpu_custom_call.1} parent=31 // pred_check
          %p242 = pneg %p91
        $region38: #{tpu_custom_call.1} parent=31 // pred_check_branch
          %244 = sbr.rel (%p242) target = $region40
        $region39: #{tpu_custom_call.1} parent=31 // pred_region
          %245 = dma.done [#allocation8], 64
        $region40: #{tpu_custom_call.1} parent=31 // pred_fallthru
          _
        %s246 = sand.u32 %s21, 1
        %s247 = scalar_lea.sflag [#allocation5], %s246
        %s248 = sand.u32 %s108, 1
        %s249 = smul.addr %s248, 32
        %s250 = scalar_lea.vmem [#allocation9], %s249
        // Predicated region
        $region41: #{tpu_custom_call.1} parent=31 // pred_check
          %p251 = pneg %p121
        $region42: #{tpu_custom_call.1} parent=31 // pred_check_branch
          %253 = sbr.rel (%p251) target = $region44
        $region43: #{tpu_custom_call.1} parent=31 // pred_region
          %254 = dma.done %s247, 512
        $region44: #{tpu_custom_call.1} parent=31 // pred_fallthru
          _
        %s255 = sand.u32 %s21, 1
        %s256 = scalar_lea.sflag [#allocation5], %s255
        %s257 = sand.u32 %s50, 1
        %s258 = smul.addr %s257, 8
        %s259 = scalar_lea.vmem [#allocation4], %s258
        %p260 = pneg %p63
        %p261 = pneg %p60
        %p262 = pneg %p91
        %p263 = pneg %p88
        %s264 = sand.u32 %s21, 1
        %s265 = scalar_lea.sflag [#allocation5], %s264
        %s266 = sand.u32 %s108, 1
        %s267 = smul.addr %s266, 32
        %s268 = scalar_lea.vmem [#allocation9], %s267
        %p269 = pneg %p121
        %p270 = pneg %p118
        %p271 = pneg %p149
        %p272 = pneg %p146
        %s273 = sand.u32 %s136, 1
        %s274 = scalar_lea.sflag [#allocation6], %s273
        %s275 = sand.u32 %s136, 1
        %s276 = smul.addr %s275, 8
        %s277 = scalar_lea.vmem [#allocation10], %s276
        %s278 = smul.u32 8, %s27
        %p279 = scmp.eq.s32.totalorder %s28, 0
        // Predicated region
        $region45: #{tpu_custom_call.1} parent=31 // pred_check
          %p280 = pneg %p279
        $region46: #{tpu_custom_call.1} parent=31 // pred_check_branch
          %282 = sbr.rel (%p280) target = $region48
        $region47: #{tpu_custom_call.1} parent=31 // pred_region
          %283 = vst [vmem:[#allocation2] sm:$0xff] 0.0
        $region48: #{tpu_custom_call.1} parent=31 // pred_fallthru
          _
        %v284 = vld [vmem:[%s250] sm:$0xf]
        %v285 = vld [vmem:[%s250 + $0x4] sm:$0xf]
        %v286 = vld [vmem:[%s250 + $0x8] sm:$0xf]
        %v287 = vld [vmem:[%s250 + $0xc] sm:$0xf]
        %v288 = vld [vmem:[%s250 + $0x10] sm:$0xf]
        %v289 = vld [vmem:[%s250 + $0x14] sm:$0xf]
        %v290 = vld [vmem:[%s250 + $0x18] sm:$0xf]
        %v291 = vld [vmem:[%s250 + $0x1c] sm:$0xf]
        %v292 = vld [vmem:[#allocation7] sm:$0xf]
        %v293 = vld [vmem:[#allocation2] sm:$0xff]
        %v294 = vmul.f32 %v284, %v292
        %v295 = vmul.f32 %v285, %v292
        %v296 = vmul.f32 %v286, %v292
        %v297 = vmul.f32 %v287, %v292
        %v298 = vmul.f32 %v288, %v292
        %v299 = vmul.f32 %v289, %v292
        %v300 = vmul.f32 %v290, %v292
        %v301 = vmul.f32 %v291, %v292
        %vm302 = vcmask 1043456
        %v303 = vsel %vm302, %v294, 0.0
        %v304 = vrot.slane %v303, 4
        %v305 = vadd.f32 %v303, %v304
        %v306 = vrot.slane %v305, 2
        %v307 = vadd.f32 %v305, %v306
        %v308 = vrot.slane %v307, 1
        %v309 = vadd.f32 %v307, %v308
        %v310 = vsel %vm302, %v295, 0.0
        %v311 = vrot.slane %v310, 4
        %v312 = vadd.f32 %v310, %v311
        %v313 = vrot.slane %v312, 2
        %v314 = vadd.f32 %v312, %v313
        %v315 = vrot.slane %v314, 1
        %v316 = vadd.f32 %v314, %v315
        %v317 = vsel %vm302, %v296, 0.0
        %v318 = vrot.slane %v317, 4
        %v319 = vadd.f32 %v317, %v318
        %v320 = vrot.slane %v319, 2
        %v321 = vadd.f32 %v319, %v320
        %v322 = vrot.slane %v321, 1
        %v323 = vadd.f32 %v321, %v322
        %v324 = vsel %vm302, %v297, 0.0
        %v325 = vrot.slane %v324, 4
        %v326 = vadd.f32 %v324, %v325
        %v327 = vrot.slane %v326, 2
        %v328 = vadd.f32 %v326, %v327
        %v329 = vrot.slane %v328, 1
        %v330 = vadd.f32 %v328, %v329
        %v331 = vsel %vm302, %v298, 0.0
        %v332 = vrot.slane %v331, 4
        %v333 = vadd.f32 %v331, %v332
        %v334 = vrot.slane %v333, 2
        %v335 = vadd.f32 %v333, %v334
        %v336 = vrot.slane %v335, 1
        %v337 = vadd.f32 %v335, %v336
        %v338 = vsel %vm302, %v299, 0.0
        %v339 = vrot.slane %v338, 4
        %v340 = vadd.f32 %v338, %v339
        %v341 = vrot.slane %v340, 2
        %v342 = vadd.f32 %v340, %v341
        %v343 = vrot.slane %v342, 1
        %v344 = vadd.f32 %v342, %v343
        %v345 = vsel %vm302, %v300, 0.0
        %v346 = vrot.slane %v345, 4
        %v347 = vadd.f32 %v345, %v346
        %v348 = vrot.slane %v347, 2
        %v349 = vadd.f32 %v347, %v348
        %v350 = vrot.slane %v349, 1
        %v351 = vadd.f32 %v349, %v350
        %v352 = vsel %vm302, %v301, 0.0
        %v353 = vrot.slane %v352, 4
        %v354 = vadd.f32 %v352, %v353
        %v355 = vrot.slane %v354, 2
        %v356 = vadd.f32 %v354, %v355
        %v357 = vrot.slane %v356, 1
        %v358 = vadd.f32 %v356, %v357
        %vm367 = vcmask 1041409
        %v368 = vsel %vm367, %v316, %v309
        %vm369 = vcmask 1042434
        %v370 = vsel %vm369, %v323, %v368
        %vm371 = vcmask 1043459
        %v372 = vsel %vm371, %v330, %v370
        %vm373 = vcmask 1044484
        %v374 = vsel %vm373, %v337, %v372
        %vm375 = vcmask 1045509
        %v376 = vsel %vm375, %v344, %v374
        %vm377 = vcmask 1046534
        %v378 = vsel %vm377, %v351, %v376
        %vm379 = vcmask 1047559
        %v380 = vsel %vm379, %v358, %v378
        %v382 = vadd.f32 %v293, %v380
        %383 = vst [vmem:[#allocation2] sm:$0xff] %v382
        // Predicated region
        $region49: #{tpu_custom_call.1} parent=31 // pred_check
          %p384 = pneg %p279
        $region50: #{tpu_custom_call.1} parent=31 // pred_check_branch
          %386 = sbr.rel (%p384) target = $region52
        $region51: #{tpu_custom_call.1} parent=31 // pred_region
          %v387 = vld [vmem:[#allocation2] sm:$0xff]
          %389 = vrot.lane.b32.xlu0 %v387, 96
          %v390 = vpop.permute.xlu0 %389
          %v392 = vadd.f32 %v387, %v390
          %393 = vrot.lane.b32.xlu0 %v387, 64
          %v394 = vpop.permute.xlu0 %393
          %v396 = vadd.f32 %v392, %v394
          %397 = vrot.lane.b32.xlu0 %v387, 32
          %v398 = vpop.permute.xlu0 %397
          %v400 = vadd.f32 %v396, %v398
          %v401 = vld [vmem:[%s237] sm:$0xff]
          %v402 = vadd.f32 %v401, %v400
          %vm403 = vcmask 261120
          %404 = vst.msk [vmem:[%s277] sm:$0xff] %vm403, %v402
        $region52: #{tpu_custom_call.1} parent=31 // pred_fallthru
          _
        %s405 = sand.u32 %s136, 1
        %s406 = scalar_lea.sflag [#allocation6], %s405
        %s407 = sand.u32 %s136, 1
        %s408 = smul.addr %s407, 8
        %s409 = scalar_lea.vmem [#allocation10], %s408
        // Predicated region
        $region53: #{tpu_custom_call.1} parent=31 // pred_check
          %p410 = pneg %p146
        $region54: #{tpu_custom_call.1} parent=31 // pred_check_branch
          %412 = sbr.rel (%p410) target = $region56
        $region55: #{tpu_custom_call.1} parent=31 // pred_region
          %s414 = ssub.s32 128, 128
          %415 = vsyncadd %s406, %s414
          %s416 = smul.addr %s26, 2
          %s417 = sadd.s32 %s27, %s416
          %s418 = smul.addr %s417, 128
          %s419 = scalar_lea.hbm %s3, %s418
          %s421 = sshll.u32 %s409, 4
          %s422 = int_to_ptr.vmem [resolvable:$true] %s421
          %424 = dma.vmem_to_hbm [thread:$0]  %s422, 128, %s419, %s406
        $region56: #{tpu_custom_call.1} parent=31 // pred_fallthru
          _
      $region32: #{tpu_custom_call.1} parent=5 // pred_fallthru
        _
      %p425 = scmp.le.s32.totalorder 2, %s16
      // Predicated region
      $region57: #{tpu_custom_call.1} parent=5 // pred_check
        %p426 = pneg %p425
      $region58: #{tpu_custom_call.1} parent=5 // pred_check_branch
        %428 = sbr.rel (%p426) target = $region60
      $region59: #{tpu_custom_call.1} parent=5 // pred_region
        %s429 = ssub.s32 %s16, 2
        // Predicated region
        $region61: #{tpu_custom_call.1} parent=59 // pred_check
          %p430 = pneg %p152
        $region62: #{tpu_custom_call.1} parent=59 // pred_check_branch
          %432 = sbr.rel (%p430) target = $region64
        $region63: #{tpu_custom_call.1} parent=59 // pred_region
          %s433 = sand.u32 %s137, 1
          %s434 = scalar_lea.sflag [#allocation6], %s433
          %s435 = sand.u32 %s137, 1
          %s436 = smul.addr %s435, 8
          %s437 = scalar_lea.vmem [#allocation10], %s436
          %438 = dma.done %s434, 128
        $region64: #{tpu_custom_call.1} parent=59 // pred_fallthru
          _
      $region60: #{tpu_custom_call.1} parent=5 // pred_fallthru
        _
    $region6: #{tpu_custom_call.1} parent=1 // loop_footer
      %s20 = sadd.s32 1, %s16
    $region7: #{tpu_custom_call.1} parent=1 // loop_footer_branch
      %15 = sbr.rel target = $region3
    $region8: #{tpu_custom_call.1} parent=1 // loop_exit
      _
    %439 = vsyncpa [#allocation5], 1
    %s440 = scalar_lea.sflag [#allocation5], 1
    %441 = vsyncpa %s440, 1
    %442 = vsyncpa [#allocation8], 1
    %443 = vsyncpa [#allocation6], 1
    %s444 = scalar_lea.sflag [#allocation6], 1
    %445 = vsyncpa %s444, 1

</llo_original>
